<compile_context>
chip_gen: v7x
topology: tpu7x:2x2x1
jax: 0.10.0
libtpu: 0.0.40
codegen_flags: <defaults>
</compile_context>

<pallas_src>
import jax
import jax.numpy as jnp
from jax.experimental import pallas as pl
from jax.experimental.pallas import tpu as pltpu

EMBEDDING_SIZE = 200  # fixed by the PyTorch module


def _round_up(x, m):
    return ((x + m - 1) // m) * m


def skip_gram_kernel(idx_ref, table_hbm, w1_ref, b1_ref, w2_ref, b2_ref,
                     out_ref, emb_vmem, h_vmem, dma_sems):
    # idx_ref:   [Bp]           int32  SMEM (scalar prefetch) token indices
    # table_hbm: [V, Ep]        f32    HBM (pl.ANY) embedding table
    # w1_ref:    [Ep, Ep]       bf16   linear1 weight, torch [out, in] layout (resident)
    # b1_ref:    [1, Ep]        f32    linear1 bias (resident)
    # w2_ref:    [block_n, Ep]  bf16   linear2 weight tile, torch [out, in] layout
    # b2_ref:    [1, block_n]   f32    linear2 bias tile
    # out_ref:   [Bp, block_n]  f32    logits tile
    # emb_vmem:  [Bp, Ep]       f32    gathered embedding rows (scratch)
    # h_vmem:    [Bp, Ep]       bf16   hidden activations (scratch)
    # dma_sems:  [Bp]           DMA semaphores (one per gathered row)

    @pl.when(pl.program_id(1) == 0)
    def _gather_and_linear1():
        # Row gather: B small DMAs issued back-to-back, then waited; the table
        # stays in HBM and only the needed rows ever touch VMEM.
        B = emb_vmem.shape[0]
        copies = []
        for b in range(B):
            row = idx_ref[b]
            cp = pltpu.make_async_copy(
                table_hbm.at[pl.ds(row, 1), :],
                emb_vmem.at[pl.ds(b, 1), :],
                dma_sems.at[b],
            )
            cp.start()
            copies.append(cp)
        for cp in copies:
            cp.wait()

        emb = emb_vmem[...].astype(jnp.bfloat16)
        # linear1: emb @ w1.T + b1  (contract the "in" axes; f32 accumulation)
        h = jax.lax.dot_general(
            emb, w1_ref[...],
            dimension_numbers=(((1,), (1,)), ((), ())),
            preferred_element_type=jnp.float32,
        ) + b1_ref[...]
        h_vmem[...] = h.astype(jnp.bfloat16)

    # linear2 tile: h @ w2_tile.T + b2_tile  (f32 accumulation), reused h.
    logits = jax.lax.dot_general(
        h_vmem[...], w2_ref[...],
        dimension_numbers=(((1,), (1,)), ((), ())),
        preferred_element_type=jnp.float32,
    ) + b2_ref[...]
    out_ref[...] = logits.astype(out_ref.dtype)


def skip_gram_forward(x, table, w1, b1, w2, b2, *, block_n=2048):
    """x: int32 [B]; table: [V, E]; w1: [E, E] (torch [out, in]); b1: [E];
    w2: [V, E] (torch [out, in]); b2: [V].  Returns f32 logits [B, V]."""
    B = x.shape[0]
    V, E = table.shape
    assert w1.shape == (E, E) and b1.shape == (E,)
    assert w2.shape == (V, E) and b2.shape == (V,)

    Ep = _round_up(E, 128)                     # 200 -> 256 for clean MXU tiles
    Bp = _round_up(B, 8)                       # sublane alignment
    block_n = _round_up(min(block_n, _round_up(V, 128)), 128)
    Vp = _round_up(V, block_n)
    num_tiles = Vp // block_n
    nc = 2 if num_tiles % 2 == 0 else 1        # split vocab tiles across 2 TCs (v7x)
    tpc = num_tiles // nc

    # Parameter prep (zero-pad + bf16 cast).  In production do this once at init.
    table_p = jnp.pad(table.astype(jnp.float32), ((0, 0), (0, Ep - E)))
    w1_p = jnp.pad(w1.astype(jnp.bfloat16), ((0, Ep - E), (0, Ep - E)))
    b1_p = jnp.pad(b1.astype(jnp.float32), (0, Ep - E)).reshape(1, Ep)
    w2_p = jnp.pad(w2.astype(jnp.bfloat16), ((0, Vp - V), (0, Ep - E)))
    b2_p = jnp.pad(b2.astype(jnp.float32), (0, Vp - V)).reshape(1, Vp)
    x_p = jnp.pad(x.astype(jnp.int32), (0, Bp - B))   # pad rows gather index 0, sliced off

    grid_spec = pltpu.PrefetchScalarGridSpec(
        num_scalar_prefetch=1,
        grid=(nc, tpc),
        in_specs=[
            pl.BlockSpec(memory_space=pl.ANY),                                  # table (HBM)
            pl.BlockSpec((Ep, Ep), lambda c, j, idx: (0, 0)),                   # w1 (resident)
            pl.BlockSpec((1, Ep), lambda c, j, idx: (0, 0)),                    # b1 (resident)
            pl.BlockSpec((block_n, Ep), lambda c, j, idx: (c * tpc + j, 0)),    # w2 tile
            pl.BlockSpec((1, block_n), lambda c, j, idx: (0, c * tpc + j)),     # b2 tile
        ],
        out_specs=pl.BlockSpec((Bp, block_n), lambda c, j, idx: (0, c * tpc + j)),
        scratch_shapes=[
            pltpu.VMEM((Bp, Ep), jnp.float32),     # gathered embedding rows
            pltpu.VMEM((Bp, Ep), jnp.bfloat16),    # hidden activations
            pltpu.SemaphoreType.DMA((Bp,)),        # one sem per gathered row
        ],
    )

    out = pl.pallas_call(
        skip_gram_kernel,
        out_shape=jax.ShapeDtypeStruct((Bp, Vp), jnp.float32),
        grid_spec=grid_spec,
        compiler_params=pltpu.CompilerParams(
            dimension_semantics=("parallel", "arbitrary"),
            vmem_limit_bytes=32 * 1024 * 1024,
        ),
    )(x_p, table_p, w1_p, b1_p, w2_p, b2_p)

    return out[:B, :V]


if __name__ == "__main__":
    key = jax.random.PRNGKey(0)
    k_tab, k_w1, k_b1, k_w2, k_b2, k_x = jax.random.split(key, 6)

    B = 8            # batch of center-word indices
    V = 512          # synthetic w2v.vocab_size
    E = EMBEDDING_SIZE

    # Deterministic synthetic parameters (shapes follow the module's __init__).
    table = jax.random.normal(k_tab, (V, E), dtype=jnp.float32)          # nn.Embedding(V, E)
    w1 = jax.random.normal(k_w1, (E, E), dtype=jnp.float32) * 0.05       # nn.Linear(E, E).weight
    b1 = jax.random.normal(k_b1, (E,), dtype=jnp.float32) * 0.05         # nn.Linear(E, E).bias
    w2 = jax.random.normal(k_w2, (V, E), dtype=jnp.float32) * 0.05       # nn.Linear(E, V).weight
    b2 = jax.random.normal(k_b2, (V,), dtype=jnp.float32) * 0.05         # nn.Linear(E, V).bias

    x = jax.random.randint(k_x, (B,), 0, V, dtype=jnp.int32)

    # block_n=128 at this toy vocab so the grid actually has several w2 tiles
    # (exercises both the compute-once path and the tile-reuse path, plus the
    # 2-way megacore split).  Production-sized vocabs should use the default.
    out = skip_gram_forward(x, table, w1, b1, w2, b2, block_n=128)
    out = jax.block_until_ready(out)

    # Reference with matching bf16 weight/activation rounding (the kernel uses
    # bf16 MXU operands with f32 accumulation).
    w1_r = w1.astype(jnp.bfloat16).astype(jnp.float32)
    w2_r = w2.astype(jnp.bfloat16).astype(jnp.float32)
    emb_ref = table[x].astype(jnp.bfloat16).astype(jnp.float32)
    h_ref = emb_ref @ w1_r.T + b1
    h_ref = h_ref.astype(jnp.bfloat16).astype(jnp.float32)
    ref = h_ref @ w2_r.T + b2

    assert out.shape == (B, V)
    assert jnp.allclose(out, ref, atol=2e-2, rtol=2e-2), \
        float(jnp.max(jnp.abs(out - ref)))

    print("KERNEL_OK")
</pallas_src>

<mosaic_0001>
module attributes {stable_mosaic.version = 11 : i64} {
  func.func @skip_gram_kernel(%arg0: i32, %arg1: i32, %arg2: memref<8xi32, #tpu.memory_space<smem>>, %arg3: memref<512x256xf32, #tpu.memory_space<any>>, %arg4: memref<256x256xbf16, #tpu.memory_space<vmem>>, %arg5: memref<1x256xf32, #tpu.memory_space<vmem>>, %arg6: memref<128x256xbf16, #tpu.memory_space<vmem>>, %arg7: memref<1x128xf32, #tpu.memory_space<vmem>>, %arg8: memref<8x128xf32, #tpu.memory_space<vmem>>, %arg9: memref<8x256xf32, #tpu.memory_space<vmem>>, %arg10: memref<8x256xbf16, #tpu.memory_space<vmem>>, %arg11: memref<8x!tpu.dma_semaphore, #tpu.memory_space<semaphore_mem>>) attributes {dimension_semantics = [#tpu.dimension_semantics<parallel>, #tpu.dimension_semantics<arbitrary>], iteration_bounds = array<i64: 2, 2>, scalar_prefetch = 1 : i64, scratch_operands = 3 : i64, tpu.core_type = #tpu.core_type<tc>, window_params = [{}, {pipeline_mode = #tpu.pipeline_mode<synchronous>, transform_indices = @transform_1, window_bounds = array<i64: 256, 256>}, {pipeline_mode = #tpu.pipeline_mode<synchronous>, transform_indices = @transform_2, window_bounds = array<i64: 1, 256>}, {transform_indices = @transform_3, window_bounds = array<i64: 128, 256>}, {transform_indices = @transform_4, window_bounds = array<i64: 1, 128>}, {transform_indices = @transform_5, window_bounds = array<i64: 8, 128>}]} {
    %c0_i32 = arith.constant 0 : i32
    %0 = arith.cmpi eq, %arg1, %c0_i32 : i32
    %1 = arith.extui %0 : i1 to i32
    %c0_i32_0 = arith.constant 0 : i32
    %2 = arith.cmpi ne, %1, %c0_i32_0 : i32
    scf.if %2 {
      %c0_8 = arith.constant 0 : index
      %10 = memref.load %arg2[%c0_8] : memref<8xi32, #tpu.memory_space<smem>>
      %c0_i32_9 = arith.constant 0 : i32
      %c0_i32_10 = arith.constant 0 : i32
      %11 = tpu.memref_slice %arg3[%10, %c0_i32_10] : memref<512x256xf32, #tpu.memory_space<any>> -> memref<1x256xf32, #tpu.memory_space<any>>
      %c0_i32_11 = arith.constant 0 : i32
      %c0_i32_12 = arith.constant 0 : i32
      %12 = tpu.memref_slice %arg9[%c0_i32_11, %c0_i32_12] : memref<8x256xf32, #tpu.memory_space<vmem>> -> memref<1x256xf32, #tpu.memory_space<vmem>>
      %13 = tpu.memref_slice %arg11[%c0_i32_9] : memref<8x!tpu.dma_semaphore, #tpu.memory_space<semaphore_mem>> -> memref<1x!tpu.dma_semaphore, #tpu.memory_space<semaphore_mem>>
      %14 = tpu.memref_squeeze %13 : memref<1x!tpu.dma_semaphore, #tpu.memory_space<semaphore_mem>> -> memref<!tpu.dma_semaphore, #tpu.memory_space<semaphore_mem>>
      tpu.enqueue_dma source(%11 : memref<1x256xf32, #tpu.memory_space<any>>) target(%12 : memref<1x256xf32, #tpu.memory_space<vmem>>) target_semaphore(%14 : memref<!tpu.dma_semaphore, #tpu.memory_space<semaphore_mem>>)
      %c1 = arith.constant 1 : index
      %15 = memref.load %arg2[%c1] : memref<8xi32, #tpu.memory_space<smem>>
      %c1_i32 = arith.constant 1 : i32
      %c0_i32_13 = arith.constant 0 : i32
      %16 = tpu.memref_slice %arg3[%15, %c0_i32_13] : memref<512x256xf32, #tpu.memory_space<any>> -> memref<1x256xf32, #tpu.memory_space<any>>
      %c1_i32_14 = arith.constant 1 : i32
      %c0_i32_15 = arith.constant 0 : i32
      %17 = tpu.memref_slice %arg9[%c1_i32_14, %c0_i32_15] : memref<8x256xf32, #tpu.memory_space<vmem>> -> memref<1x256xf32, #tpu.memory_space<vmem>>
      %18 = tpu.memref_slice %arg11[%c1_i32] : memref<8x!tpu.dma_semaphore, #tpu.memory_space<semaphore_mem>> -> memref<1x!tpu.dma_semaphore, #tpu.memory_space<semaphore_mem>>
      %19 = tpu.memref_squeeze %18 : memref<1x!tpu.dma_semaphore, #tpu.memory_space<semaphore_mem>> -> memref<!tpu.dma_semaphore, #tpu.memory_space<semaphore_mem>>
      tpu.enqueue_dma source(%16 : memref<1x256xf32, #tpu.memory_space<any>>) target(%17 : memref<1x256xf32, #tpu.memory_space<vmem>>) target_semaphore(%19 : memref<!tpu.dma_semaphore, #tpu.memory_space<semaphore_mem>>)
      %c2 = arith.constant 2 : index
      %20 = memref.load %arg2[%c2] : memref<8xi32, #tpu.memory_space<smem>>
      %c2_i32 = arith.constant 2 : i32
      %c0_i32_16 = arith.constant 0 : i32
      %21 = tpu.memref_slice %arg3[%20, %c0_i32_16] : memref<512x256xf32, #tpu.memory_space<any>> -> memref<1x256xf32, #tpu.memory_space<any>>
      %c2_i32_17 = arith.constant 2 : i32
      %c0_i32_18 = arith.constant 0 : i32
      %22 = tpu.memref_slice %arg9[%c2_i32_17, %c0_i32_18] : memref<8x256xf32, #tpu.memory_space<vmem>> -> memref<1x256xf32, #tpu.memory_space<vmem>>
      %23 = tpu.memref_slice %arg11[%c2_i32] : memref<8x!tpu.dma_semaphore, #tpu.memory_space<semaphore_mem>> -> memref<1x!tpu.dma_semaphore, #tpu.memory_space<semaphore_mem>>
      %24 = tpu.memref_squeeze %23 : memref<1x!tpu.dma_semaphore, #tpu.memory_space<semaphore_mem>> -> memref<!tpu.dma_semaphore, #tpu.memory_space<semaphore_mem>>
      tpu.enqueue_dma source(%21 : memref<1x256xf32, #tpu.memory_space<any>>) target(%22 : memref<1x256xf32, #tpu.memory_space<vmem>>) target_semaphore(%24 : memref<!tpu.dma_semaphore, #tpu.memory_space<semaphore_mem>>)
      %c3 = arith.constant 3 : index
      %25 = memref.load %arg2[%c3] : memref<8xi32, #tpu.memory_space<smem>>
      %c3_i32 = arith.constant 3 : i32
      %c0_i32_19 = arith.constant 0 : i32
      %26 = tpu.memref_slice %arg3[%25, %c0_i32_19] : memref<512x256xf32, #tpu.memory_space<any>> -> memref<1x256xf32, #tpu.memory_space<any>>
      %c3_i32_20 = arith.constant 3 : i32
      %c0_i32_21 = arith.constant 0 : i32
      %27 = tpu.memref_slice %arg9[%c3_i32_20, %c0_i32_21] : memref<8x256xf32, #tpu.memory_space<vmem>> -> memref<1x256xf32, #tpu.memory_space<vmem>>
      %28 = tpu.memref_slice %arg11[%c3_i32] : memref<8x!tpu.dma_semaphore, #tpu.memory_space<semaphore_mem>> -> memref<1x!tpu.dma_semaphore, #tpu.memory_space<semaphore_mem>>
      %29 = tpu.memref_squeeze %28 : memref<1x!tpu.dma_semaphore, #tpu.memory_space<semaphore_mem>> -> memref<!tpu.dma_semaphore, #tpu.memory_space<semaphore_mem>>
      tpu.enqueue_dma source(%26 : memref<1x256xf32, #tpu.memory_space<any>>) target(%27 : memref<1x256xf32, #tpu.memory_space<vmem>>) target_semaphore(%29 : memref<!tpu.dma_semaphore, #tpu.memory_space<semaphore_mem>>)
      %c4 = arith.constant 4 : index
      %30 = memref.load %arg2[%c4] : memref<8xi32, #tpu.memory_space<smem>>
      %c4_i32 = arith.constant 4 : i32
      %c0_i32_22 = arith.constant 0 : i32
      %31 = tpu.memref_slice %arg3[%30, %c0_i32_22] : memref<512x256xf32, #tpu.memory_space<any>> -> memref<1x256xf32, #tpu.memory_space<any>>
      %c4_i32_23 = arith.constant 4 : i32
      %c0_i32_24 = arith.constant 0 : i32
      %32 = tpu.memref_slice %arg9[%c4_i32_23, %c0_i32_24] : memref<8x256xf32, #tpu.memory_space<vmem>> -> memref<1x256xf32, #tpu.memory_space<vmem>>
      %33 = tpu.memref_slice %arg11[%c4_i32] : memref<8x!tpu.dma_semaphore, #tpu.memory_space<semaphore_mem>> -> memref<1x!tpu.dma_semaphore, #tpu.memory_space<semaphore_mem>>
      %34 = tpu.memref_squeeze %33 : memref<1x!tpu.dma_semaphore, #tpu.memory_space<semaphore_mem>> -> memref<!tpu.dma_semaphore, #tpu.memory_space<semaphore_mem>>
      tpu.enqueue_dma source(%31 : memref<1x256xf32, #tpu.memory_space<any>>) target(%32 : memref<1x256xf32, #tpu.memory_space<vmem>>) target_semaphore(%34 : memref<!tpu.dma_semaphore, #tpu.memory_space<semaphore_mem>>)
      %c5 = arith.constant 5 : index
      %35 = memref.load %arg2[%c5] : memref<8xi32, #tpu.memory_space<smem>>
      %c5_i32 = arith.constant 5 : i32
      %c0_i32_25 = arith.constant 0 : i32
      %36 = tpu.memref_slice %arg3[%35, %c0_i32_25] : memref<512x256xf32, #tpu.memory_space<any>> -> memref<1x256xf32, #tpu.memory_space<any>>
      %c5_i32_26 = arith.constant 5 : i32
      %c0_i32_27 = arith.constant 0 : i32
      %37 = tpu.memref_slice %arg9[%c5_i32_26, %c0_i32_27] : memref<8x256xf32, #tpu.memory_space<vmem>> -> memref<1x256xf32, #tpu.memory_space<vmem>>
      %38 = tpu.memref_slice %arg11[%c5_i32] : memref<8x!tpu.dma_semaphore, #tpu.memory_space<semaphore_mem>> -> memref<1x!tpu.dma_semaphore, #tpu.memory_space<semaphore_mem>>
      %39 = tpu.memref_squeeze %38 : memref<1x!tpu.dma_semaphore, #tpu.memory_space<semaphore_mem>> -> memref<!tpu.dma_semaphore, #tpu.memory_space<semaphore_mem>>
      tpu.enqueue_dma source(%36 : memref<1x256xf32, #tpu.memory_space<any>>) target(%37 : memref<1x256xf32, #tpu.memory_space<vmem>>) target_semaphore(%39 : memref<!tpu.dma_semaphore, #tpu.memory_space<semaphore_mem>>)
      %c6 = arith.constant 6 : index
      %40 = memref.load %arg2[%c6] : memref<8xi32, #tpu.memory_space<smem>>
      %c6_i32 = arith.constant 6 : i32
      %c0_i32_28 = arith.constant 0 : i32
      %41 = tpu.memref_slice %arg3[%40, %c0_i32_28] : memref<512x256xf32, #tpu.memory_space<any>> -> memref<1x256xf32, #tpu.memory_space<any>>
      %c6_i32_29 = arith.constant 6 : i32
      %c0_i32_30 = arith.constant 0 : i32
      %42 = tpu.memref_slice %arg9[%c6_i32_29, %c0_i32_30] : memref<8x256xf32, #tpu.memory_space<vmem>> -> memref<1x256xf32, #tpu.memory_space<vmem>>
      %43 = tpu.memref_slice %arg11[%c6_i32] : memref<8x!tpu.dma_semaphore, #tpu.memory_space<semaphore_mem>> -> memref<1x!tpu.dma_semaphore, #tpu.memory_space<semaphore_mem>>
      %44 = tpu.memref_squeeze %43 : memref<1x!tpu.dma_semaphore, #tpu.memory_space<semaphore_mem>> -> memref<!tpu.dma_semaphore, #tpu.memory_space<semaphore_mem>>
      tpu.enqueue_dma source(%41 : memref<1x256xf32, #tpu.memory_space<any>>) target(%42 : memref<1x256xf32, #tpu.memory_space<vmem>>) target_semaphore(%44 : memref<!tpu.dma_semaphore, #tpu.memory_space<semaphore_mem>>)
      %c7 = arith.constant 7 : index
      %45 = memref.load %arg2[%c7] : memref<8xi32, #tpu.memory_space<smem>>
      %c7_i32 = arith.constant 7 : i32
      %c0_i32_31 = arith.constant 0 : i32
      %46 = tpu.memref_slice %arg3[%45, %c0_i32_31] : memref<512x256xf32, #tpu.memory_space<any>> -> memref<1x256xf32, #tpu.memory_space<any>>
      %c7_i32_32 = arith.constant 7 : i32
      %c0_i32_33 = arith.constant 0 : i32
      %47 = tpu.memref_slice %arg9[%c7_i32_32, %c0_i32_33] : memref<8x256xf32, #tpu.memory_space<vmem>> -> memref<1x256xf32, #tpu.memory_space<vmem>>
      %48 = tpu.memref_slice %arg11[%c7_i32] : memref<8x!tpu.dma_semaphore, #tpu.memory_space<semaphore_mem>> -> memref<1x!tpu.dma_semaphore, #tpu.memory_space<semaphore_mem>>
      %49 = tpu.memref_squeeze %48 : memref<1x!tpu.dma_semaphore, #tpu.memory_space<semaphore_mem>> -> memref<!tpu.dma_semaphore, #tpu.memory_space<semaphore_mem>>
      tpu.enqueue_dma source(%46 : memref<1x256xf32, #tpu.memory_space<any>>) target(%47 : memref<1x256xf32, #tpu.memory_space<vmem>>) target_semaphore(%49 : memref<!tpu.dma_semaphore, #tpu.memory_space<semaphore_mem>>)
      %c0_i32_34 = arith.constant 0 : i32
      %c0_i32_35 = arith.constant 0 : i32
      %50 = tpu.memref_slice %arg3[%10, %c0_i32_35] : memref<512x256xf32, #tpu.memory_space<any>> -> memref<1x256xf32, #tpu.memory_space<any>>
      %c0_i32_36 = arith.constant 0 : i32
      %c0_i32_37 = arith.constant 0 : i32
      %51 = tpu.memref_slice %arg9[%c0_i32_36, %c0_i32_37] : memref<8x256xf32, #tpu.memory_space<vmem>> -> memref<1x256xf32, #tpu.memory_space<vmem>>
      %52 = tpu.memref_slice %arg11[%c0_i32_34] : memref<8x!tpu.dma_semaphore, #tpu.memory_space<semaphore_mem>> -> memref<1x!tpu.dma_semaphore, #tpu.memory_space<semaphore_mem>>
      %53 = tpu.memref_squeeze %52 : memref<1x!tpu.dma_semaphore, #tpu.memory_space<semaphore_mem>> -> memref<!tpu.dma_semaphore, #tpu.memory_space<semaphore_mem>>
      tpu.wait_dma2 semaphore(%53 : memref<!tpu.dma_semaphore, #tpu.memory_space<semaphore_mem>>) src(%50 : memref<1x256xf32, #tpu.memory_space<any>>) dst(%51 : memref<1x256xf32, #tpu.memory_space<vmem>>)
      %c1_i32_38 = arith.constant 1 : i32
      %c0_i32_39 = arith.constant 0 : i32
      %54 = tpu.memref_slice %arg3[%15, %c0_i32_39] : memref<512x256xf32, #tpu.memory_space<any>> -> memref<1x256xf32, #tpu.memory_space<any>>
      %c1_i32_40 = arith.constant 1 : i32
      %c0_i32_41 = arith.constant 0 : i32
      %55 = tpu.memref_slice %arg9[%c1_i32_40, %c0_i32_41] : memref<8x256xf32, #tpu.memory_space<vmem>> -> memref<1x256xf32, #tpu.memory_space<vmem>>
      %56 = tpu.memref_slice %arg11[%c1_i32_38] : memref<8x!tpu.dma_semaphore, #tpu.memory_space<semaphore_mem>> -> memref<1x!tpu.dma_semaphore, #tpu.memory_space<semaphore_mem>>
      %57 = tpu.memref_squeeze %56 : memref<1x!tpu.dma_semaphore, #tpu.memory_space<semaphore_mem>> -> memref<!tpu.dma_semaphore, #tpu.memory_space<semaphore_mem>>
      tpu.wait_dma2 semaphore(%57 : memref<!tpu.dma_semaphore, #tpu.memory_space<semaphore_mem>>) src(%54 : memref<1x256xf32, #tpu.memory_space<any>>) dst(%55 : memref<1x256xf32, #tpu.memory_space<vmem>>)
      %c2_i32_42 = arith.constant 2 : i32
      %c0_i32_43 = arith.constant 0 : i32
      %58 = tpu.memref_slice %arg3[%20, %c0_i32_43] : memref<512x256xf32, #tpu.memory_space<any>> -> memref<1x256xf32, #tpu.memory_space<any>>
      %c2_i32_44 = arith.constant 2 : i32
      %c0_i32_45 = arith.constant 0 : i32
      %59 = tpu.memref_slice %arg9[%c2_i32_44, %c0_i32_45] : memref<8x256xf32, #tpu.memory_space<vmem>> -> memref<1x256xf32, #tpu.memory_space<vmem>>
      %60 = tpu.memref_slice %arg11[%c2_i32_42] : memref<8x!tpu.dma_semaphore, #tpu.memory_space<semaphore_mem>> -> memref<1x!tpu.dma_semaphore, #tpu.memory_space<semaphore_mem>>
      %61 = tpu.memref_squeeze %60 : memref<1x!tpu.dma_semaphore, #tpu.memory_space<semaphore_mem>> -> memref<!tpu.dma_semaphore, #tpu.memory_space<semaphore_mem>>
      tpu.wait_dma2 semaphore(%61 : memref<!tpu.dma_semaphore, #tpu.memory_space<semaphore_mem>>) src(%58 : memref<1x256xf32, #tpu.memory_space<any>>) dst(%59 : memref<1x256xf32, #tpu.memory_space<vmem>>)
      %c3_i32_46 = arith.constant 3 : i32
      %c0_i32_47 = arith.constant 0 : i32
      %62 = tpu.memref_slice %arg3[%25, %c0_i32_47] : memref<512x256xf32, #tpu.memory_space<any>> -> memref<1x256xf32, #tpu.memory_space<any>>
      %c3_i32_48 = arith.constant 3 : i32
      %c0_i32_49 = arith.constant 0 : i32
      %63 = tpu.memref_slice %arg9[%c3_i32_48, %c0_i32_49] : memref<8x256xf32, #tpu.memory_space<vmem>> -> memref<1x256xf32, #tpu.memory_space<vmem>>
      %64 = tpu.memref_slice %arg11[%c3_i32_46] : memref<8x!tpu.dma_semaphore, #tpu.memory_space<semaphore_mem>> -> memref<1x!tpu.dma_semaphore, #tpu.memory_space<semaphore_mem>>
      %65 = tpu.memref_squeeze %64 : memref<1x!tpu.dma_semaphore, #tpu.memory_space<semaphore_mem>> -> memref<!tpu.dma_semaphore, #tpu.memory_space<semaphore_mem>>
      tpu.wait_dma2 semaphore(%65 : memref<!tpu.dma_semaphore, #tpu.memory_space<semaphore_mem>>) src(%62 : memref<1x256xf32, #tpu.memory_space<any>>) dst(%63 : memref<1x256xf32, #tpu.memory_space<vmem>>)
      %c4_i32_50 = arith.constant 4 : i32
      %c0_i32_51 = arith.constant 0 : i32
      %66 = tpu.memref_slice %arg3[%30, %c0_i32_51] : memref<512x256xf32, #tpu.memory_space<any>> -> memref<1x256xf32, #tpu.memory_space<any>>
      %c4_i32_52 = arith.constant 4 : i32
      %c0_i32_53 = arith.constant 0 : i32
      %67 = tpu.memref_slice %arg9[%c4_i32_52, %c0_i32_53] : memref<8x256xf32, #tpu.memory_space<vmem>> -> memref<1x256xf32, #tpu.memory_space<vmem>>
      %68 = tpu.memref_slice %arg11[%c4_i32_50] : memref<8x!tpu.dma_semaphore, #tpu.memory_space<semaphore_mem>> -> memref<1x!tpu.dma_semaphore, #tpu.memory_space<semaphore_mem>>
      %69 = tpu.memref_squeeze %68 : memref<1x!tpu.dma_semaphore, #tpu.memory_space<semaphore_mem>> -> memref<!tpu.dma_semaphore, #tpu.memory_space<semaphore_mem>>
      tpu.wait_dma2 semaphore(%69 : memref<!tpu.dma_semaphore, #tpu.memory_space<semaphore_mem>>) src(%66 : memref<1x256xf32, #tpu.memory_space<any>>) dst(%67 : memref<1x256xf32, #tpu.memory_space<vmem>>)
      %c5_i32_54 = arith.constant 5 : i32
      %c0_i32_55 = arith.constant 0 : i32
      %70 = tpu.memref_slice %arg3[%35, %c0_i32_55] : memref<512x256xf32, #tpu.memory_space<any>> -> memref<1x256xf32, #tpu.memory_space<any>>
      %c5_i32_56 = arith.constant 5 : i32
      %c0_i32_57 = arith.constant 0 : i32
      %71 = tpu.memref_slice %arg9[%c5_i32_56, %c0_i32_57] : memref<8x256xf32, #tpu.memory_space<vmem>> -> memref<1x256xf32, #tpu.memory_space<vmem>>
      %72 = tpu.memref_slice %arg11[%c5_i32_54] : memref<8x!tpu.dma_semaphore, #tpu.memory_space<semaphore_mem>> -> memref<1x!tpu.dma_semaphore, #tpu.memory_space<semaphore_mem>>
      %73 = tpu.memref_squeeze %72 : memref<1x!tpu.dma_semaphore, #tpu.memory_space<semaphore_mem>> -> memref<!tpu.dma_semaphore, #tpu.memory_space<semaphore_mem>>
      tpu.wait_dma2 semaphore(%73 : memref<!tpu.dma_semaphore, #tpu.memory_space<semaphore_mem>>) src(%70 : memref<1x256xf32, #tpu.memory_space<any>>) dst(%71 : memref<1x256xf32, #tpu.memory_space<vmem>>)
      %c6_i32_58 = arith.constant 6 : i32
      %c0_i32_59 = arith.constant 0 : i32
      %74 = tpu.memref_slice %arg3[%40, %c0_i32_59] : memref<512x256xf32, #tpu.memory_space<any>> -> memref<1x256xf32, #tpu.memory_space<any>>
      %c6_i32_60 = arith.constant 6 : i32
      %c0_i32_61 = arith.constant 0 : i32
      %75 = tpu.memref_slice %arg9[%c6_i32_60, %c0_i32_61] : memref<8x256xf32, #tpu.memory_space<vmem>> -> memref<1x256xf32, #tpu.memory_space<vmem>>
      %76 = tpu.memref_slice %arg11[%c6_i32_58] : memref<8x!tpu.dma_semaphore, #tpu.memory_space<semaphore_mem>> -> memref<1x!tpu.dma_semaphore, #tpu.memory_space<semaphore_mem>>
      %77 = tpu.memref_squeeze %76 : memref<1x!tpu.dma_semaphore, #tpu.memory_space<semaphore_mem>> -> memref<!tpu.dma_semaphore, #tpu.memory_space<semaphore_mem>>
      tpu.wait_dma2 semaphore(%77 : memref<!tpu.dma_semaphore, #tpu.memory_space<semaphore_mem>>) src(%74 : memref<1x256xf32, #tpu.memory_space<any>>) dst(%75 : memref<1x256xf32, #tpu.memory_space<vmem>>)
      %c7_i32_62 = arith.constant 7 : i32
      %c0_i32_63 = arith.constant 0 : i32
      %78 = tpu.memref_slice %arg3[%45, %c0_i32_63] : memref<512x256xf32, #tpu.memory_space<any>> -> memref<1x256xf32, #tpu.memory_space<any>>
      %c7_i32_64 = arith.constant 7 : i32
      %c0_i32_65 = arith.constant 0 : i32
      %79 = tpu.memref_slice %arg9[%c7_i32_64, %c0_i32_65] : memref<8x256xf32, #tpu.memory_space<vmem>> -> memref<1x256xf32, #tpu.memory_space<vmem>>
      %80 = tpu.memref_slice %arg11[%c7_i32_62] : memref<8x!tpu.dma_semaphore, #tpu.memory_space<semaphore_mem>> -> memref<1x!tpu.dma_semaphore, #tpu.memory_space<semaphore_mem>>
      %81 = tpu.memref_squeeze %80 : memref<1x!tpu.dma_semaphore, #tpu.memory_space<semaphore_mem>> -> memref<!tpu.dma_semaphore, #tpu.memory_space<semaphore_mem>>
      tpu.wait_dma2 semaphore(%81 : memref<!tpu.dma_semaphore, #tpu.memory_space<semaphore_mem>>) src(%78 : memref<1x256xf32, #tpu.memory_space<any>>) dst(%79 : memref<1x256xf32, #tpu.memory_space<vmem>>)
      %c0_66 = arith.constant 0 : index
      %c0_67 = arith.constant 0 : index
      %82 = vector.load %arg9[%c0_66, %c0_67] : memref<8x256xf32, #tpu.memory_space<vmem>>, vector<8x256xf32>
      %83 = arith.truncf %82 : vector<8x256xf32> to vector<8x256xbf16>
      %c0_68 = arith.constant 0 : index
      %c0_69 = arith.constant 0 : index
      %84 = vector.load %arg4[%c0_68, %c0_69] : memref<256x256xbf16, #tpu.memory_space<vmem>>, vector<256x256xbf16>
      %cst_70 = arith.constant dense<0.000000e+00> : vector<8x256xf32>
      %85 = tpu.matmul %83, %84, %cst_70 {dimension_numbers = #tpu.dot_dimension_numbers<[1], [1], [0], [0], [0, 0, 1, 0], [], []>} : vector<8x256xbf16>, vector<256x256xbf16>, vector<8x256xf32> -> vector<8x256xf32>
      %c0_71 = arith.constant 0 : index
      %c0_72 = arith.constant 0 : index
      %86 = vector.load %arg5[%c0_71, %c0_72] : memref<1x256xf32, #tpu.memory_space<vmem>>, vector<1x256xf32>
      %87 = vector.broadcast %86 : vector<1x256xf32> to vector<8x256xf32>
      %88 = arith.addf %85, %87 : vector<8x256xf32>
      %89 = arith.truncf %88 : vector<8x256xf32> to vector<8x256xbf16>
      %c0_73 = arith.constant 0 : index
      %c0_74 = arith.constant 0 : index
      %90 = vector.load %arg10[%c0_73, %c0_74] : memref<8x256xbf16, #tpu.memory_space<vmem>>, vector<8x256xbf16>
      tpu.vector_store %arg10[%c0_73, %c0_74], %89 {strides = array<i32>} : memref<8x256xbf16, #tpu.memory_space<vmem>>, vector<8x256xbf16>,
    } else {
    }
    %c0 = arith.constant 0 : index
    %c0_1 = arith.constant 0 : index
    %3 = vector.load %arg10[%c0, %c0_1] : memref<8x256xbf16, #tpu.memory_space<vmem>>, vector<8x256xbf16>
    %c0_2 = arith.constant 0 : index
    %c0_3 = arith.constant 0 : index
    %4 = vector.load %arg6[%c0_2, %c0_3] : memref<128x256xbf16, #tpu.memory_space<vmem>>, vector<128x256xbf16>
    %cst = arith.constant dense<0.000000e+00> : vector<8x128xf32>
    %5 = tpu.matmul %3, %4, %cst {dimension_numbers = #tpu.dot_dimension_numbers<[1], [1], [0], [0], [0, 0, 1, 0], [], []>} : vector<8x256xbf16>, vector<128x256xbf16>, vector<8x128xf32> -> vector<8x128xf32>
    %c0_4 = arith.constant 0 : index
    %c0_5 = arith.constant 0 : index
    %6 = vector.load %arg7[%c0_4, %c0_5] : memref<1x128xf32, #tpu.memory_space<vmem>>, vector<1x128xf32>
    %7 = vector.broadcast %6 : vector<1x128xf32> to vector<8x128xf32>
    %8 = arith.addf %5, %7 : vector<8x128xf32>
    %c0_6 = arith.constant 0 : index
    %c0_7 = arith.constant 0 : index
    %9 = vector.load %arg8[%c0_6, %c0_7] : memref<8x128xf32, #tpu.memory_space<vmem>>, vector<8x128xf32>
    tpu.vector_store %arg8[%c0_6, %c0_7], %8 {strides = array<i32>} : memref<8x128xf32, #tpu.memory_space<vmem>>, vector<8x128xf32>,
    return
  }
  func.func @transform_1(%arg0: i32, %arg1: i32, %arg2: memref<8xi32, #tpu.memory_space<smem>>) -> (i32, i32) {
    %c0_i32 = arith.constant 0 : i32
    %c0_i32_0 = arith.constant 0 : i32
    %c0_i32_1 = arith.constant 0 : i32
    return %c0_i32, %c0_i32_0 : i32, i32
  }
  func.func @transform_2(%arg0: i32, %arg1: i32, %arg2: memref<8xi32, #tpu.memory_space<smem>>) -> (i32, i32) {
    %c0_i32 = arith.constant 0 : i32
    %c0_i32_0 = arith.constant 0 : i32
    %c0_i32_1 = arith.constant 0 : i32
    return %c0_i32, %c0_i32_0 : i32, i32
  }
  func.func @transform_3(%arg0: i32, %arg1: i32, %arg2: memref<8xi32, #tpu.memory_space<smem>>) -> (i32, i32) {
    %c2_i32 = arith.constant 2 : i32
    %0 = arith.muli %arg0, %c2_i32 : i32
    %1 = arith.addi %0, %arg1 : i32
    %c0_i32 = arith.constant 0 : i32
    %c0_i32_0 = arith.constant 0 : i32
    return %1, %c0_i32 : i32, i32
  }
  func.func @transform_4(%arg0: i32, %arg1: i32, %arg2: memref<8xi32, #tpu.memory_space<smem>>) -> (i32, i32) {
    %c2_i32 = arith.constant 2 : i32
    %0 = arith.muli %arg0, %c2_i32 : i32
    %1 = arith.addi %0, %arg1 : i32
    %c0_i32 = arith.constant 0 : i32
    %c0_i32_0 = arith.constant 0 : i32
    return %c0_i32, %1 : i32, i32
  }
  func.func @transform_5(%arg0: i32, %arg1: i32, %arg2: memref<8xi32, #tpu.memory_space<smem>>) -> (i32, i32) {
    %c2_i32 = arith.constant 2 : i32
    %0 = arith.muli %arg0, %c2_i32 : i32
    %1 = arith.addi %0, %arg1 : i32
    %c0_i32 = arith.constant 0 : i32
    %c0_i32_0 = arith.constant 0 : i32
    return %c0_i32, %1 : i32, i32
  }
}

</mosaic_0001>

<llo_original>
// kernel: tpu_custom_call.1
$region0: #{tpu_custom_call.1}
  #allocation0 [shape = 'u32[]', space=smem, size = 0x4, offset = 0x4, fixed_abs, tag = 'smem constant byte address 0x4 - core index']
  #allocation1 [shape = 'u32[144,128]{1,0:T(1,128)}', space=vmem, size = 0x12000, scoped, tag = 'internal scratch']
  #allocation2 [shape = 'f32[8,256]{1,0:T(8,128)}', space=vmem, size = 0x2000, scoped, tag = 'scratch operand']
  #allocation3 [shape = 'bf16[8,256]{1,0:T(8,128)(2,1)}', space=vmem, size = 0x1000, scoped, tag = 'scratch operand']
  #allocation4 [shape = 's32[8]{0}', space=sflag, size = 0x20, scoped, tag = 'scratch operand']
  #allocation5 [shape = 's32[1]{0}', space=sflag, size = 0x4, scoped, tag = 'scoped memory for tpu_custom_call.1']
  #allocation6 [shape = 'u8[512]{0}', space=smem, size = 0x200, scoped, tag = 'prefetched SMEM operand 0']
  #allocation13 [shape = 's32[]', space=sflag, size = 0x4, offset = 0, fixed_abs, tag = 'sflag constant byte address 0x0 - dummy sync flag']
  #allocation14 [shape = 's32[]', space=sflag, size = 0x4, offset = 0, fixed_abs, tag = 'sflag constant byte address 0x0 - dummy sync flag']
  #allocation15 [shape = 's32[]', space=sflag, size = 0x4, offset = 0, fixed_abs, tag = 'sflag constant byte address 0x0 - dummy sync flag']
  #allocation16 [shape = 's32[]', space=sflag, size = 0x4, offset = 0, fixed_abs, tag = 'sflag constant byte address 0x0 - dummy sync flag']
  #allocation17 [shape = 's32[]', space=sflag, size = 0x4, offset = 0, fixed_abs, tag = 'sflag constant byte address 0x0 - dummy sync flag']
  #allocation18 [shape = 's32[]', space=sflag, size = 0x4, offset = 0, fixed_abs, tag = 'sflag constant byte address 0x0 - dummy sync flag']
  #allocation19 [shape = 's32[]', space=sflag, size = 0x4, offset = 0, fixed_abs, tag = 'sflag constant byte address 0x0 - dummy sync flag']
  #allocation20 [shape = 's32[]', space=sflag, size = 0x4, offset = 0, fixed_abs, tag = 'sflag constant byte address 0x0 - dummy sync flag']
  %s0 = inlined_call_operand.hbm [shape: s32[8], index: 0, kind: input, shape index: {}]
  %s1 = inlined_call_operand.hbm [shape: f32[512,256], index: 1, kind: input, shape index: {}]
  %s2 = inlined_call_operand.hbm [shape: bf16[256,256], index: 2, kind: input, shape index: {}]
  %s3 = inlined_call_operand.vmem [shape: f32[1,256], index: 3, kind: input, shape index: {}]
  %s4 = inlined_call_operand.hbm [shape: bf16[512,256], index: 4, kind: input, shape index: {}]
  %s5 = inlined_call_operand.vmem [shape: f32[1,512], index: 5, kind: input, shape index: {}]
  %s6 = inlined_call_operand.hbm [shape: f32[8,512], index: 6, kind: output, shape index: {}]
  %s7 = sld [smem:[#allocation0]]
  $region61: #{tpu_custom_call.1} parent=0
    _
  %s9 = ssub.s32 1, %s7
  %s10 = scalar_select 0, %s9, %s7
  %12 = dma.hbm_to_smem %s0, 16, [#allocation6], [#allocation5]
  %13 = dma.done [#allocation5], 16
  %14 = sfence
  $region1: #{tpu_custom_call.1} parent=0
    #allocation7 [shape = 'u8[131072]{0}', space=vmem, size = 0x20000, scoped, tag = 'input window, operand 2, single buffered']
    #allocation8 [shape = 's32[2]{0}', space=sflag, size = 0x8, scoped, tag = 'scoped memory for tpu_custom_call.1']
    #allocation9 [shape = 's32[2]{0}', space=sflag, size = 0x8, scoped, tag = 'scoped memory for tpu_custom_call.1']
    #allocation10 [shape = 'u8[131072]{0}', space=vmem, size = 0x20000, scoped, tag = 'input window, operand 4']
    #allocation11 [shape = 's32[2]{0}', space=sflag, size = 0x8, scoped, tag = 'scoped memory for tpu_custom_call.1']
    #allocation12 [shape = 'u8[8192]{0}', space=vmem, size = 0x2000, scoped, tag = 'output window, operand 0']
    %15 = vsyncpa [#allocation8], 0
    %16 = vsyncpa [#allocation11], 0
    %s17 = scalar_lea.sflag [#allocation11], 1
    %18 = vsyncpa %s17, 0
    %19 = vsyncpa [#allocation9], 0
    %s20 = scalar_lea.sflag [#allocation9], 1
    %21 = vsyncpa %s20, 0
    loop: start=0, step=1, limit=6
    $region2: #{tpu_custom_call.1} parent=1 // loop_pre_header
      _
    $region3: #{tpu_custom_call.1} parent=1 // loop_header
      %s23 = sphi 0, %s27
      %p24 = scmp.ge.s32.totalorder %s23, 6
      %s30 = sphi 0, %s42
      %s31 = sphi 0, %s38
      %s32 = sphi 0, %s30
      %s33 = sphi 0, %s31
      %s34 = sphi 0, %s32
      %s35 = sphi 0, %s33
      %s43 = sphi 0, %s43
      %s45 = sphi 0, %s43
      %s46 = sphi 0, %s45
      %s60 = sphi 0, %s46
      %s64 = sphi 0, %s64
      %s66 = sphi 0, %s64
      %s67 = sphi 0, %s66
      %s81 = sphi 0, %s67
      %s91 = sphi 0, %s93
      %s94 = sphi 0, %s91
      %s95 = sphi 0, %s94
      %s111 = sphi 0, %s95
      %s121 = sphi 0, %s123
      %s124 = sphi 0, %s121
      %s125 = sphi 0, %s124
      %s141 = sphi 0, %s125
      %s151 = sphi 0, %s153
      %s154 = sphi 0, %s151
      %s155 = sphi 0, %s154
      %s171 = sphi 0, %s155
    $region4: #{tpu_custom_call.1} parent=1 // loop_header_branch
      %26 = sbr.rel (%p24) target = $region8
    $region5: #{tpu_custom_call.1} parent=1 // loop_body
      %s28 = ssub.s32 %s23, 1
      %s29 = ssub.s32 %s23, 2
      %s36 = sadd.s32 1, %s31
      %p37 = scmp.ge.s32.totalorder %s36, 2
      %s38 = scalar_select %p37, 0, %s36
      %s39 = sadd.s32 1, %s30
      %s40 = scalar_select %p37, %s39, %s30
      %p41 = scmp.ge.s32.totalorder %s40, 2
      %s42 = scalar_select %p41, 0, %s40
      %s44 = sadd.s32 %s43, 1
      %p47 = scmp.eq.s32.totalorder %s23, 3
      %p48 = scmp.ne.s32.totalorder %s43, %s45
      %p49 = scmp.eq.s32.totalorder %s23, 0
      %p50 = por %p48, %p49
      %p51 = scmp.ne.s32.totalorder %s43, %s45
      %p52 = scmp.eq.s32.totalorder %s28, 3
      %p53 = por %p51, %p52
      %p54 = scmp.ne.s32.totalorder %s45, %s46
      %p55 = scmp.eq.s32.totalorder %s28, 0
      %p56 = por %p54, %p55
      %p57 = scmp.ne.s32.totalorder %s45, %s46
      %p58 = scmp.eq.s32.totalorder %s29, 3
      %p59 = por %p57, %p58
      %p61 = scmp.ne.s32.totalorder %s46, %s60
      %p62 = scmp.eq.s32.totalorder %s29, 0
      %p63 = por %p61, %p62
      %s65 = sadd.s32 %s64, 1
      %p68 = scmp.eq.s32.totalorder %s23, 3
      %p69 = scmp.ne.s32.totalorder %s64, %s66
      %p70 = scmp.eq.s32.totalorder %s23, 0
      %p71 = por %p69, %p70
      %p72 = scmp.ne.s32.totalorder %s64, %s66
      %p73 = scmp.eq.s32.totalorder %s28, 3
      %p74 = por %p72, %p73
      %p75 = scmp.ne.s32.totalorder %s66, %s67
      %p76 = scmp.eq.s32.totalorder %s28, 0
      %p77 = por %p75, %p76
      %p78 = scmp.ne.s32.totalorder %s66, %s67
      %p79 = scmp.eq.s32.totalorder %s29, 3
      %p80 = por %p78, %p79
      %p82 = scmp.ne.s32.totalorder %s67, %s81
      %p83 = scmp.eq.s32.totalorder %s29, 0
      %p84 = por %p82, %p83
      %s85 = smul.u32 %s30, 2
      %s86 = sadd.s32 %s85, %s31
      %s87 = smul.u32 %s42, 2
      %s88 = sadd.s32 %s87, %s38
      %s89 = ssub.s32 %s86, %s88
      %p90 = scmp.eq.s32.totalorder %s89, 0
      %s92 = sadd.s32 %s91, 1
      %s93 = scalar_select %p90, %s91, %s92
      %p96 = pneg %p90
      %p97 = scmp.eq.s32.totalorder %s23, 3
      %p98 = por %p96, %p97
      %p99 = scmp.ne.s32.totalorder %s91, %s94
      %p100 = scmp.eq.s32.totalorder %s23, 0
      %p101 = por %p99, %p100
      %p102 = scmp.ne.s32.totalorder %s91, %s94
      %p103 = scmp.eq.s32.totalorder %s28, 3
      %p104 = por %p102, %p103
      %p105 = scmp.ne.s32.totalorder %s94, %s95
      %p106 = scmp.eq.s32.totalorder %s28, 0
      %p107 = por %p105, %p106
      %p108 = scmp.ne.s32.totalorder %s94, %s95
      %p109 = scmp.eq.s32.totalorder %s29, 3
      %p110 = por %p108, %p109
      %p112 = scmp.ne.s32.totalorder %s95, %s111
      %p113 = scmp.eq.s32.totalorder %s29, 0
      %p114 = por %p112, %p113
      %s115 = smul.u32 %s30, 2
      %s116 = sadd.s32 %s115, %s31
      %s117 = smul.u32 %s42, 2
      %s118 = sadd.s32 %s117, %s38
      %s119 = ssub.s32 %s116, %s118
      %p120 = scmp.eq.s32.totalorder %s119, 0
      %s122 = sadd.s32 %s121, 1
      %s123 = scalar_select %p120, %s121, %s122
      %p126 = pneg %p120
      %p127 = scmp.eq.s32.totalorder %s23, 3
      %p128 = por %p126, %p127
      %p129 = scmp.ne.s32.totalorder %s121, %s124
      %p130 = scmp.eq.s32.totalorder %s23, 0
      %p131 = por %p129, %p130
      %p132 = scmp.ne.s32.totalorder %s121, %s124
      %p133 = scmp.eq.s32.totalorder %s28, 3
      %p134 = por %p132, %p133
      %p135 = scmp.ne.s32.totalorder %s124, %s125
      %p136 = scmp.eq.s32.totalorder %s28, 0
      %p137 = por %p135, %p136
      %p138 = scmp.ne.s32.totalorder %s124, %s125
      %p139 = scmp.eq.s32.totalorder %s29, 3
      %p140 = por %p138, %p139
      %p142 = scmp.ne.s32.totalorder %s125, %s141
      %p143 = scmp.eq.s32.totalorder %s29, 0
      %p144 = por %p142, %p143
      %s145 = smul.u32 %s30, 2
      %s146 = sadd.s32 %s145, %s31
      %s147 = smul.u32 %s42, 2
      %s148 = sadd.s32 %s147, %s38
      %s149 = ssub.s32 %s146, %s148
      %p150 = scmp.eq.s32.totalorder %s149, 0
      %s152 = sadd.s32 %s151, 1
      %s153 = scalar_select %p150, %s151, %s152
      %p156 = pneg %p150
      %p157 = scmp.eq.s32.totalorder %s23, 3
      %p158 = por %p156, %p157
      %p159 = scmp.ne.s32.totalorder %s151, %s154
      %p160 = scmp.eq.s32.totalorder %s23, 0
      %p161 = por %p159, %p160
      %p162 = scmp.ne.s32.totalorder %s151, %s154
      %p163 = scmp.eq.s32.totalorder %s28, 3
      %p164 = por %p162, %p163
      %p165 = scmp.ne.s32.totalorder %s154, %s155
      %p166 = scmp.eq.s32.totalorder %s28, 0
      %p167 = por %p165, %p166
      %p168 = scmp.ne.s32.totalorder %s154, %s155
      %p169 = scmp.eq.s32.totalorder %s29, 3
      %p170 = por %p168, %p169
      %p172 = scmp.ne.s32.totalorder %s155, %s171
      %p173 = scmp.eq.s32.totalorder %s29, 0
      %p174 = por %p172, %p173
      %p175 = scmp.le.s32.totalorder 1, %s23
      %p176 = scmp.lt.s32.totalorder %s23, 5
      %p177 = pnand %p175, %p176
      %p178 = pneg %p177
      // Predicated region
      $region9: #{tpu_custom_call.1} parent=5 // pred_check
        _
      $region10: #{tpu_custom_call.1} parent=5 // pred_check_branch
        %180 = sbr.rel (%p177) target = $region12
      $region11: #{tpu_custom_call.1} parent=5 // pred_region
        %s181 = ssub.s32 %s23, 1
        // Predicated region
        $region13: #{tpu_custom_call.1} parent=11 // pred_check
          %p182 = pneg %p56
        $region14: #{tpu_custom_call.1} parent=11 // pred_check_branch
          %184 = sbr.rel (%p182) target = $region16
        $region15: #{tpu_custom_call.1} parent=11 // pred_region
          %s186 = ssub.s32 4096, 4096
          %187 = vsyncadd [#allocation8], %s186
          %s188 = sshll.u32 [#allocation7], 4
          %s189 = int_to_ptr.vmem [resolvable:$true] %s188
          %194 = dma.hbm_to_vmem [thread:$0]  %s2, 4096, %s189, [#allocation8], 128, 128, 8
        $region16: #{tpu_custom_call.1} parent=11 // pred_fallthru
          _
        // Predicated region
        $region17: #{tpu_custom_call.1} parent=11 // pred_check
          %p195 = pneg %p77
        $region18: #{tpu_custom_call.1} parent=11 // pred_check_branch
          %197 = sbr.rel (%p195) target = $region20
        $region19: #{tpu_custom_call.1} parent=11 // pred_region
          _
        $region20: #{tpu_custom_call.1} parent=11 // pred_fallthru
          _
      $region12: #{tpu_custom_call.1} parent=5 // pred_fallthru
        _
      %p198 = scmp.lt.s32.totalorder %s23, 4
      // Predicated region
      $region21: #{tpu_custom_call.1} parent=5 // pred_check
        %p199 = pneg %p198
      $region22: #{tpu_custom_call.1} parent=5 // pred_check_branch
        %201 = sbr.rel (%p199) target = $region24
      $region23: #{tpu_custom_call.1} parent=5 // pred_region
        // Predicated region
        $region25: #{tpu_custom_call.1} parent=23 // pred_check
          %p202 = pneg %p101
        $region26: #{tpu_custom_call.1} parent=23 // pred_check_branch
          %204 = sbr.rel (%p202) target = $region28
        $region27: #{tpu_custom_call.1} parent=23 // pred_region
          %s205 = sand.u32 %s91, 1
          %s206 = scalar_lea.sflag [#allocation11], %s205
          %s207 = sand.u32 %s91, 1
          %s208 = smul.addr %s207, 128
          %s209 = scalar_lea.vmem [#allocation10], %s208
          %s210 = smul.u32 %s30, 2
          %s211 = sadd.s32 %s210, %s31
          %s212 = smul.u32 16, %s211
          %s214 = ssub.s32 2048, 2048
          %215 = vsyncadd %s206, %s214
          %s216 = smul.addr %s212, 2
          %s217 = smul.addr %s216, 64
          %s218 = scalar_lea.hbm %s4, %s217
          %s219 = sshll.u32 %s209, 4
          %s220 = int_to_ptr.vmem [resolvable:$true] %s219
          %225 = dma.hbm_to_vmem [thread:$0]  %s218, 2048, %s220, %s206, 128, 128, 8
        $region28: #{tpu_custom_call.1} parent=23 // pred_fallthru
          _
        // Predicated region
        $region29: #{tpu_custom_call.1} parent=23 // pred_check
          %p226 = pneg %p131
        $region30: #{tpu_custom_call.1} parent=23 // pred_check_branch
          %228 = sbr.rel (%p226) target = $region32
        $region31: #{tpu_custom_call.1} parent=23 // pred_region
          %s229 = smul.u32 %s30, 2
          %s230 = sadd.s32 %s229, %s31
          %p231 = scmp.lt.s32.totalorder %s230, 3
          %s232 = scalar_select %p231, %s230, 3
          %s233 = scalar_lea.vmem %s5, %s232
          %s234 = smul.u32 %s30, 2
          %s235 = sadd.s32 %s234, %s31
        $region32: #{tpu_custom_call.1} parent=23 // pred_fallthru
          _
      $region24: #{tpu_custom_call.1} parent=5 // pred_fallthru
        _
      %p236 = scmp.le.s32.totalorder 1, %s23
      %p237 = scmp.lt.s32.totalorder %s23, 5
      %p238 = pnand %p236, %p237
      %p239 = pneg %p238
      // Predicated region
      $region33: #{tpu_custom_call.1} parent=5 // pred_check
        _
      $region34: #{tpu_custom_call.1} parent=5 // pred_check_branch
        %241 = sbr.rel (%p238) target = $region36
      $region35: #{tpu_custom_call.1} parent=5 // pred_region
        %s242 = ssub.s32 %s23, 1
        // Predicated region
        $region37: #{tpu_custom_call.1} parent=35 // pred_check
          %p243 = pneg %p56
        $region38: #{tpu_custom_call.1} parent=35 // pred_check_branch
          %245 = sbr.rel (%p243) target = $region40
        $region39: #{tpu_custom_call.1} parent=35 // pred_region
          %246 = dma.done [#allocation8], 4096
        $region40: #{tpu_custom_call.1} parent=35 // pred_fallthru
          _
        %s247 = sand.u32 %s94, 1
        %s248 = scalar_lea.sflag [#allocation11], %s247
        %s249 = sand.u32 %s94, 1
        %s250 = smul.addr %s249, 128
        %s251 = scalar_lea.vmem [#allocation10], %s250
        // Predicated region
        $region41: #{tpu_custom_call.1} parent=35 // pred_check
          %p252 = pneg %p107
        $region42: #{tpu_custom_call.1} parent=35 // pred_check_branch
          %254 = sbr.rel (%p252) target = $region44
        $region43: #{tpu_custom_call.1} parent=35 // pred_region
          %255 = dma.done %s248, 2048
        $region44: #{tpu_custom_call.1} parent=35 // pred_fallthru
          _
        %p256 = pneg %p56
        %p257 = pneg %p53
        %p258 = pneg %p77
        %p259 = pneg %p74
        %s260 = sand.u32 %s94, 1
        %s261 = scalar_lea.sflag [#allocation11], %s260
        %s262 = sand.u32 %s94, 1
        %s263 = smul.addr %s262, 128
        %s264 = scalar_lea.vmem [#allocation10], %s263
        %p265 = pneg %p107
        %p266 = pneg %p104
        %s267 = smul.u32 %s32, 2
        %s268 = sadd.s32 %s267, %s33
        %p269 = scmp.lt.s32.totalorder %s268, 3
        %s270 = scalar_select %p269, %s268, 3
        %s271 = scalar_lea.vmem %s5, %s270
        %p272 = pneg %p137
        %p273 = pneg %p134
        %p274 = pneg %p167
        %p275 = pneg %p164
        %s276 = sand.u32 %s154, 1
        %s277 = scalar_lea.sflag [#allocation9], %s276
        %s278 = sand.u32 %s154, 1
        %s279 = smul.addr %s278, 8
        %s280 = scalar_lea.vmem [#allocation12], %s279
        %s281 = smul.u32 %s32, 2
        %s282 = sadd.s32 %s281, %s33
        %s283 = smul.u32 16, %s282
        %s284 = smul.u32 %s32, 2
        %s285 = sadd.s32 %s284, %s33
        %p286 = scmp.lt.s32.totalorder %s285, 3
        %s287 = scalar_select %p286, %s285, 3
        %s288 = scalar_lea.vmem %s5, %s287
        %s289 = smul.u32 %s32, 2
        %s290 = sadd.s32 %s289, %s33
        %s291 = smul.u32 %s32, 2
        %s292 = sadd.s32 %s291, %s33
        %p294 = scmp.eq.s32.totalorder %s33, 0
        // Predicated region
        $region45: #{tpu_custom_call.1} parent=35 // pred_check
          %p295 = pneg %p294
        $region46: #{tpu_custom_call.1} parent=35 // pred_check_branch
          %297 = sbr.rel (%p295) target = $region48
        $region47: #{tpu_custom_call.1} parent=35 // pred_region
          %s298 = sld [smem:[#allocation6]]
          %s299 = sshrl.u32 %s298, 3
          %s300 = sand.u32 %s298, 7
          %s301 = smul.u32 %s299, 16
          %s302 = sadd.s32 %s300, %s301
          %s303 = smul.addr %s302, 16
          %s304 = scalar_lea.hbm %s1, %s303
          %s306 = sshll.u32 [#allocation2], 4
          %s307 = int_to_ptr.vmem [resolvable:$true] %s306
          %309 = dma.hbm_to_vmem [thread:$0]  %s304, 32, %s307, [#allocation4], 128, 128, 1
          %s310 = sld [smem:[#allocation6 + $0x1]]
          %s311 = sshrl.u32 %s310, 3
          %s312 = sand.u32 %s310, 7
          %s313 = smul.u32 %s311, 16
          %s314 = sadd.s32 %s312, %s313
          %s315 = smul.addr %s314, 16
          %s316 = scalar_lea.hbm %s1, %s315
          %s317 = scalar_lea.vmem [#allocation2], 1
          %s318 = scalar_lea.sflag [#allocation4], 1
          %s320 = sshll.u32 %s317, 4
          %s321 = int_to_ptr.vmem [resolvable:$true] %s320
          %323 = dma.hbm_to_vmem [thread:$0]  %s316, 32, %s321, %s318, 128, 128, 1
          %s324 = sld [smem:[#allocation6 + $0x2]]
          %s325 = sshrl.u32 %s324, 3
          %s326 = sand.u32 %s324, 7
          %s327 = smul.u32 %s325, 16
          %s328 = sadd.s32 %s326, %s327
          %s329 = smul.addr %s328, 16
          %s330 = scalar_lea.hbm %s1, %s329
          %s331 = scalar_lea.vmem [#allocation2], 2
          %s332 = scalar_lea.sflag [#allocation4], 2
          %s334 = sshll.u32 %s331, 4
          %s335 = int_to_ptr.vmem [resolvable:$true] %s334
          %337 = dma.hbm_to_vmem [thread:$0]  %s330, 32, %s335, %s332, 128, 128, 1
          %s338 = sld [smem:[#allocation6 + $0x3]]
          %s339 = sshrl.u32 %s338, 3
          %s340 = sand.u32 %s338, 7
          %s341 = smul.u32 %s339, 16
          %s342 = sadd.s32 %s340, %s341
          %s343 = smul.addr %s342, 16
          %s344 = scalar_lea.hbm %s1, %s343
          %s345 = scalar_lea.vmem [#allocation2], 3
          %s346 = scalar_lea.sflag [#allocation4], 3
          %s348 = sshll.u32 %s345, 4
          %s349 = int_to_ptr.vmem [resolvable:$true] %s348
          %351 = dma.hbm_to_vmem [thread:$0]  %s344, 32, %s349, %s346, 128, 128, 1
          %s352 = sld [smem:[#allocation6 + $0x4]]
          %s353 = sshrl.u32 %s352, 3
          %s354 = sand.u32 %s352, 7
          %s355 = smul.u32 %s353, 16
          %s356 = sadd.s32 %s354, %s355
          %s357 = smul.addr %s356, 16
          %s358 = scalar_lea.hbm %s1, %s357
          %s359 = scalar_lea.vmem [#allocation2], 4
          %s360 = scalar_lea.sflag [#allocation4], 4
          %s362 = sshll.u32 %s359, 4
          %s363 = int_to_ptr.vmem [resolvable:$true] %s362
          %365 = dma.hbm_to_vmem [thread:$0]  %s358, 32, %s363, %s360, 128, 128, 1
          %s366 = sld [smem:[#allocation6 + $0x5]]
          %s367 = sshrl.u32 %s366, 3
          %s368 = sand.u32 %s366, 7
          %s369 = smul.u32 %s367, 16
          %s370 = sadd.s32 %s368, %s369
          %s371 = smul.addr %s370, 16
          %s372 = scalar_lea.hbm %s1, %s371
          %s373 = scalar_lea.vmem [#allocation2], 5
          %s374 = scalar_lea.sflag [#allocation4], 5
          %s376 = sshll.u32 %s373, 4
          %s377 = int_to_ptr.vmem [resolvable:$true] %s376
          %379 = dma.hbm_to_vmem [thread:$0]  %s372, 32, %s377, %s374, 128, 128, 1
          %s380 = sld [smem:[#allocation6 + $0x6]]
          %s381 = sshrl.u32 %s380, 3
          %s382 = sand.u32 %s380, 7
          %s383 = smul.u32 %s381, 16
          %s384 = sadd.s32 %s382, %s383
          %s385 = smul.addr %s384, 16
          %s386 = scalar_lea.hbm %s1, %s385
          %s387 = scalar_lea.vmem [#allocation2], 6
          %s388 = scalar_lea.sflag [#allocation4], 6
          %s390 = sshll.u32 %s387, 4
          %s391 = int_to_ptr.vmem [resolvable:$true] %s390
          %393 = dma.hbm_to_vmem [thread:$0]  %s386, 32, %s391, %s388, 128, 128, 1
          %s394 = sld [smem:[#allocation6 + $0x7]]
          %s395 = sshrl.u32 %s394, 3
          %s396 = sand.u32 %s394, 7
          %s397 = smul.u32 %s395, 16
          %s398 = sadd.s32 %s396, %s397
          %s399 = smul.addr %s398, 16
          %s400 = scalar_lea.hbm %s1, %s399
          %s401 = scalar_lea.vmem [#allocation2], 7
          %s402 = scalar_lea.sflag [#allocation4], 7
          %s404 = sshll.u32 %s401, 4
          %s405 = int_to_ptr.vmem [resolvable:$true] %s404
          %407 = dma.hbm_to_vmem [thread:$0]  %s400, 32, %s405, %s402, 128, 128, 1
          %s408 = smul.u32 1, 2
          %s409 = sshll.u32 %s408, 4
          %410 = dma.done [#allocation4], %s409
          %s411 = sshll.u32 %s408, 4
          %412 = dma.done %s318, %s411
          %s413 = sshll.u32 %s408, 4
          %414 = dma.done %s332, %s413
          %s415 = sshll.u32 %s408, 4
          %416 = dma.done %s346, %s415
          %s417 = sshll.u32 %s408, 4
          %418 = dma.done %s360, %s417
          %s419 = sshll.u32 %s408, 4
          %420 = dma.done %s374, %s419
          %s421 = sshll.u32 %s408, 4
          %422 = dma.done %s388, %s421
          %s423 = sshll.u32 %s408, 4
          %424 = dma.done %s402, %s423
          %v425 = vld [vmem:[#allocation2] sm:$0xff]
          %v426 = vld [vmem:[#allocation2 + $0x8] sm:$0xff]
          %v427 = vpack.c.bf16 %v425, %v425
          %v428 = vpack.c.bf16 %v426, %v426
          %v429 = vld [vmem:[#allocation7] sm:$0xff]
          %v430 = vld [vmem:[#allocation7 + $0x8] sm:$0xff]
          %v431 = vld [vmem:[#allocation7 + $0x10] sm:$0xff]
          %v432 = vld [vmem:[#allocation7 + $0x18] sm:$0xff]
          %v433 = vld [vmem:[#allocation7 + $0x20] sm:$0xff]
          %v434 = vld [vmem:[#allocation7 + $0x28] sm:$0xff]
          %v435 = vld [vmem:[#allocation7 + $0x30] sm:$0xff]
          %v436 = vld [vmem:[#allocation7 + $0x38] sm:$0xff]
          %v437 = vld [vmem:[#allocation7 + $0x40] sm:$0xff]
          %v438 = vld [vmem:[#allocation7 + $0x48] sm:$0xff]
          %v439 = vld [vmem:[#allocation7 + $0x50] sm:$0xff]
          %v440 = vld [vmem:[#allocation7 + $0x58] sm:$0xff]
          %v441 = vld [vmem:[#allocation7 + $0x60] sm:$0xff]
          %v442 = vld [vmem:[#allocation7 + $0x68] sm:$0xff]
          %v443 = vld [vmem:[#allocation7 + $0x70] sm:$0xff]
          %v444 = vld [vmem:[#allocation7 + $0x78] sm:$0xff]
          %v445 = vld [vmem:[#allocation7 + $0x80] sm:$0xff]
          %v446 = vld [vmem:[#allocation7 + $0x88] sm:$0xff]
          %v447 = vld [vmem:[#allocation7 + $0x90] sm:$0xff]
          %v448 = vld [vmem:[#allocation7 + $0x98] sm:$0xff]
          %v449 = vld [vmem:[#allocation7 + $0xa0] sm:$0xff]
          %v450 = vld [vmem:[#allocation7 + $0xa8] sm:$0xff]
          %v451 = vld [vmem:[#allocation7 + $0xb0] sm:$0xff]
          %v452 = vld [vmem:[#allocation7 + $0xb8] sm:$0xff]
          %v453 = vld [vmem:[#allocation7 + $0xc0] sm:$0xff]
          %v454 = vld [vmem:[#allocation7 + $0xc8] sm:$0xff]
          %v455 = vld [vmem:[#allocation7 + $0xd0] sm:$0xff]
          %v456 = vld [vmem:[#allocation7 + $0xd8] sm:$0xff]
          %v457 = vld [vmem:[#allocation7 + $0xe0] sm:$0xff]
          %v458 = vld [vmem:[#allocation7 + $0xe8] sm:$0xff]
          %v459 = vld [vmem:[#allocation7 + $0xf0] sm:$0xff]
          %v460 = vld [vmem:[#allocation7 + $0xf8] sm:$0xff]
          %v461 = vld [vmem:[%s3] sm:$0x3]
          %v463 = vlaneseq
          %v464 = vshrl.u32 %v463, 7
          %v465 = vsub.s32 0, %v464
          %v466 = vrot.slane %v461, %v465
          %v467 = vlaneseq
          %v468 = vshrl.u32 %v467, 7
          %v469 = vsub.s32 1, %v468
          %v470 = vrot.slane %v461, %v469
          %v505 = vunpack.c.l.b16 %v429
          %v506 = vunpack.c.h.b16 %v429
          %v507 = vunpack.c.l.b16 %v430
          %v508 = vunpack.c.h.b16 %v430
          %v509 = vunpack.c.l.b16 %v431
          %v510 = vunpack.c.h.b16 %v431
          %v511 = vunpack.c.l.b16 %v432
          %v512 = vunpack.c.h.b16 %v432
          %v513 = vunpack.c.l.b16 %v433
          %v514 = vunpack.c.h.b16 %v433
          %v515 = vunpack.c.l.b16 %v434
          %v516 = vunpack.c.h.b16 %v434
          %v517 = vunpack.c.l.b16 %v435
          %v518 = vunpack.c.h.b16 %v435
          %v519 = vunpack.c.l.b16 %v436
          %v520 = vunpack.c.h.b16 %v436
          %v521 = vunpack.c.l.b16 %v437
          %v522 = vunpack.c.h.b16 %v437
          %v523 = vunpack.c.l.b16 %v438
          %v524 = vunpack.c.h.b16 %v438
          %v525 = vunpack.c.l.b16 %v439
          %v526 = vunpack.c.h.b16 %v439
          %v527 = vunpack.c.l.b16 %v440
          %v528 = vunpack.c.h.b16 %v440
          %v529 = vunpack.c.l.b16 %v441
          %v530 = vunpack.c.h.b16 %v441
          %v531 = vunpack.c.l.b16 %v442
          %v532 = vunpack.c.h.b16 %v442
          %v533 = vunpack.c.l.b16 %v443
          %v534 = vunpack.c.h.b16 %v443
          %v535 = vunpack.c.l.b16 %v444
          %v536 = vunpack.c.h.b16 %v444
          %v537 = vunpack.c.l.b16 %v445
          %v538 = vunpack.c.h.b16 %v445
          %v539 = vunpack.c.l.b16 %v446
          %v540 = vunpack.c.h.b16 %v446
          %v541 = vunpack.c.l.b16 %v447
          %v542 = vunpack.c.h.b16 %v447
          %v543 = vunpack.c.l.b16 %v448
          %v544 = vunpack.c.h.b16 %v448
          %v545 = vunpack.c.l.b16 %v449
          %v546 = vunpack.c.h.b16 %v449
          %v547 = vunpack.c.l.b16 %v450
          %v548 = vunpack.c.h.b16 %v450
          %v549 = vunpack.c.l.b16 %v451
          %v550 = vunpack.c.h.b16 %v451
          %v551 = vunpack.c.l.b16 %v452
          %v552 = vunpack.c.h.b16 %v452
          %v553 = vunpack.c.l.b16 %v453
          %v554 = vunpack.c.h.b16 %v453
          %v555 = vunpack.c.l.b16 %v454
          %v556 = vunpack.c.h.b16 %v454
          %v557 = vunpack.c.l.b16 %v455
          %v558 = vunpack.c.h.b16 %v455
          %v559 = vunpack.c.l.b16 %v456
          %v560 = vunpack.c.h.b16 %v456
          %v561 = vunpack.c.l.b16 %v457
          %v562 = vunpack.c.h.b16 %v457
          %v563 = vunpack.c.l.b16 %v458
          %v564 = vunpack.c.h.b16 %v458
          %v565 = vunpack.c.l.b16 %v459
          %v566 = vunpack.c.h.b16 %v459
          %v567 = vunpack.c.l.b16 %v460
          %v568 = vunpack.c.h.b16 %v460
          %v569 = vpack.c.b16 %v507, %v505
          %v570 = vpack.c.b16 %v508, %v506
          %v571 = vpack.c.b16 %v511, %v509
          %v572 = vpack.c.b16 %v512, %v510
          %v573 = vpack.c.b16 %v515, %v513
          %v574 = vpack.c.b16 %v516, %v514
          %v575 = vpack.c.b16 %v519, %v517
          %v576 = vpack.c.b16 %v520, %v518
          %v577 = vpack.c.b16 %v523, %v521
          %v578 = vpack.c.b16 %v524, %v522
          %v579 = vpack.c.b16 %v527, %v525
          %v580 = vpack.c.b16 %v528, %v526
          %v581 = vpack.c.b16 %v531, %v529
          %v582 = vpack.c.b16 %v532, %v530
          %v583 = vpack.c.b16 %v535, %v533
          %v584 = vpack.c.b16 %v536, %v534
          %v585 = vpack.c.b16 %v539, %v537
          %v586 = vpack.c.b16 %v540, %v538
          %v587 = vpack.c.b16 %v543, %v541
          %v588 = vpack.c.b16 %v544, %v542
          %v589 = vpack.c.b16 %v547, %v545
          %v590 = vpack.c.b16 %v548, %v546
          %v591 = vpack.c.b16 %v551, %v549
          %v592 = vpack.c.b16 %v552, %v550
          %v593 = vpack.c.b16 %v555, %v553
          %v594 = vpack.c.b16 %v556, %v554
          %v595 = vpack.c.b16 %v559, %v557
          %v596 = vpack.c.b16 %v560, %v558
          %v597 = vpack.c.b16 %v563, %v561
          %v598 = vpack.c.b16 %v564, %v562
          %v599 = vpack.c.b16 %v567, %v565
          %v600 = vpack.c.b16 %v568, %v566
          %633 = vmatprep.subr.bf16.mxu0 %v570
          %634 = vmatpush1.bf16.xpose.msra.mxu0 %v569
          %635 = vmatprep.subr.bf16.mxu0 %v572
          %636 = vmatpush1.bf16.xpose.msra.mxu0 %v571
          %637 = vmatprep.subr.bf16.mxu0 %v574
          %638 = vmatpush1.bf16.xpose.msra.mxu0 %v573
          %639 = vmatprep.subr.bf16.mxu0 %v576
          %640 = vmatpush1.bf16.xpose.msra.mxu0 %v575
          %641 = vmatprep.subr.bf16.mxu0 %v578
          %642 = vmatpush1.bf16.xpose.msra.mxu0 %v577
          %643 = vmatprep.subr.bf16.mxu0 %v580
          %644 = vmatpush1.bf16.xpose.msra.mxu0 %v579
          %645 = vmatprep.subr.bf16.mxu0 %v582
          %646 = vmatpush1.bf16.xpose.msra.mxu0 %v581
          %647 = vmatprep.subr.bf16.mxu0 %v584
          %648 = vmatpush1.bf16.xpose.msra.mxu0 %v583
          %649 = vmatprep.subr.bf16.mxu0 %v586
          %650 = vmatpush1.bf16.xpose.msra.mxu0 %v585
          %651 = vmatprep.subr.bf16.mxu0 %v588
          %652 = vmatpush1.bf16.xpose.msra.mxu0 %v587
          %653 = vmatprep.subr.bf16.mxu0 %v590
          %654 = vmatpush1.bf16.xpose.msra.mxu0 %v589
          %655 = vmatprep.subr.bf16.mxu0 %v592
          %656 = vmatpush1.bf16.xpose.msra.mxu0 %v591
          %657 = vmatprep.subr.bf16.mxu0 %v594
          %658 = vmatpush1.bf16.xpose.msra.mxu0 %v593
          %659 = vmatprep.subr.bf16.mxu0 %v596
          %660 = vmatpush1.bf16.xpose.msra.mxu0 %v595
          %661 = vmatprep.subr.bf16.mxu0 %v598
          %662 = vmatpush1.bf16.xpose.msra.mxu0 %v597
          %663 = vmatprep.subr.bf16.mxu0 %v600
          %664 = vmatpush1.bf16.xpose.msra.mxu0 %v599
          %665 = vmatprep.mubr.bf16.mxu0 %v428
          %666 = vmatmul.mubr.bf16.gmra.mrb[0].mxu0 %v427
          %v667 = vpop.f32.mrb[0].mxu0
          %v668 = vadd.f32 %v466, %v667
          %v669 = vpop.f32.mrb[0].mxu0
          %v670 = vadd.f32 %v470, %v669
          %v671 = vpop.f32.mrb[0].mxu0
          %v672 = vpop.f32.mrb[0].mxu0
          %673 = vdwg.mxu0
          %v674 = vpack.c.bf16 %v668, %v668
          %v675 = vpack.c.bf16 %v670, %v670
          %v678 = vunpack.c.l.b16 %v674
          %v679 = vunpack.c.l.b16 %v675
          %v680 = vpack.c.b16 %v679, %v678
          %682 = vst [vmem:[#allocation3] sm:$0xff] %v680
        $region48: #{tpu_custom_call.1} parent=35 // pred_fallthru
          _
        %v683 = vld [vmem:[#allocation3] sm:$0xff]
        %v684 = vld [vmem:[%s251] sm:$0xff]
        %v685 = vld [vmem:[%s251 + $0x8] sm:$0xff]
        %v686 = vld [vmem:[%s251 + $0x10] sm:$0xff]
        %v687 = vld [vmem:[%s251 + $0x18] sm:$0xff]
        %v688 = vld [vmem:[%s251 + $0x20] sm:$0xff]
        %v689 = vld [vmem:[%s251 + $0x28] sm:$0xff]
        %v690 = vld [vmem:[%s251 + $0x30] sm:$0xff]
        %v691 = vld [vmem:[%s251 + $0x38] sm:$0xff]
        %v692 = vld [vmem:[%s251 + $0x40] sm:$0xff]
        %v693 = vld [vmem:[%s251 + $0x48] sm:$0xff]
        %v694 = vld [vmem:[%s251 + $0x50] sm:$0xff]
        %v695 = vld [vmem:[%s251 + $0x58] sm:$0xff]
        %v696 = vld [vmem:[%s251 + $0x60] sm:$0xff]
        %v697 = vld [vmem:[%s251 + $0x68] sm:$0xff]
        %v698 = vld [vmem:[%s251 + $0x70] sm:$0xff]
        %v699 = vld [vmem:[%s251 + $0x78] sm:$0xff]
        %v700 = vld [vmem:[%s288] sm:$0x1]
        %v702 = vlaneseq
        %v703 = vshrl.u32 %v702, 7
        %v704 = vsub.s32 0, %v703
        %v705 = vrot.slane %v700, %v704
        %v708 = vunpack.c.l.b16 %v683
        %v709 = vunpack.c.h.b16 %v683
        %v710 = vpack.c.b16 %v708, %v708
        %v711 = vpack.c.b16 %v709, %v709
        %v730 = vunpack.c.l.b16 %v684
        %v731 = vunpack.c.h.b16 %v684
        %v732 = vunpack.c.l.b16 %v685
        %v733 = vunpack.c.h.b16 %v685
        %v734 = vunpack.c.l.b16 %v686
        %v735 = vunpack.c.h.b16 %v686
        %v736 = vunpack.c.l.b16 %v687
        %v737 = vunpack.c.h.b16 %v687
        %v738 = vunpack.c.l.b16 %v688
        %v739 = vunpack.c.h.b16 %v688
        %v740 = vunpack.c.l.b16 %v689
        %v741 = vunpack.c.h.b16 %v689
        %v742 = vunpack.c.l.b16 %v690
        %v743 = vunpack.c.h.b16 %v690
        %v744 = vunpack.c.l.b16 %v691
        %v745 = vunpack.c.h.b16 %v691
        %v746 = vunpack.c.l.b16 %v692
        %v747 = vunpack.c.h.b16 %v692
        %v748 = vunpack.c.l.b16 %v693
        %v749 = vunpack.c.h.b16 %v693
        %v750 = vunpack.c.l.b16 %v694
        %v751 = vunpack.c.h.b16 %v694
        %v752 = vunpack.c.l.b16 %v695
        %v753 = vunpack.c.h.b16 %v695
        %v754 = vunpack.c.l.b16 %v696
        %v755 = vunpack.c.h.b16 %v696
        %v756 = vunpack.c.l.b16 %v697
        %v757 = vunpack.c.h.b16 %v697
        %v758 = vunpack.c.l.b16 %v698
        %v759 = vunpack.c.h.b16 %v698
        %v760 = vunpack.c.l.b16 %v699
        %v761 = vunpack.c.h.b16 %v699
        %v762 = vpack.c.b16 %v732, %v730
        %v763 = vpack.c.b16 %v733, %v731
        %v764 = vpack.c.b16 %v736, %v734
        %v765 = vpack.c.b16 %v737, %v735
        %v766 = vpack.c.b16 %v740, %v738
        %v767 = vpack.c.b16 %v741, %v739
        %v768 = vpack.c.b16 %v744, %v742
        %v769 = vpack.c.b16 %v745, %v743
        %v770 = vpack.c.b16 %v748, %v746
        %v771 = vpack.c.b16 %v749, %v747
        %v772 = vpack.c.b16 %v752, %v750
        %v773 = vpack.c.b16 %v753, %v751
        %v774 = vpack.c.b16 %v756, %v754
        %v775 = vpack.c.b16 %v757, %v755
        %v776 = vpack.c.b16 %v760, %v758
        %v777 = vpack.c.b16 %v761, %v759
        %794 = vmatprep.subr.bf16.mxu0 %v763
        %795 = vmatpush1.bf16.xpose.msra.mxu0 %v762
        %796 = vmatprep.subr.bf16.mxu0 %v765
        %797 = vmatpush1.bf16.xpose.msra.mxu0 %v764
        %798 = vmatprep.subr.bf16.mxu0 %v767
        %799 = vmatpush1.bf16.xpose.msra.mxu0 %v766
        %800 = vmatprep.subr.bf16.mxu0 %v769
        %801 = vmatpush1.bf16.xpose.msra.mxu0 %v768
        %802 = vmatprep.subr.bf16.mxu0 %v771
        %803 = vmatpush1.bf16.xpose.msra.mxu0 %v770
        %804 = vmatprep.subr.bf16.mxu0 %v773
        %805 = vmatpush1.bf16.xpose.msra.mxu0 %v772
        %806 = vmatprep.subr.bf16.mxu0 %v775
        %807 = vmatpush1.bf16.xpose.msra.mxu0 %v774
        %808 = vmatprep.subr.bf16.mxu0 %v777
        %809 = vmatpush1.bf16.xpose.msra.mxu0 %v776
        %810 = vmatprep.subr.bf16.mxu0 0
        %811 = vmatpush1.bf16.xpose.msra.mxu0 0
        %812 = vmatprep.subr.bf16.mxu0 0
        %813 = vmatpush1.bf16.xpose.msra.mxu0 0
        %814 = vmatprep.subr.bf16.mxu0 0
        %815 = vmatpush1.bf16.xpose.msra.mxu0 0
        %816 = vmatprep.subr.bf16.mxu0 0
        %817 = vmatpush1.bf16.xpose.msra.mxu0 0
        %818 = vmatprep.subr.bf16.mxu0 0
        %819 = vmatpush1.bf16.xpose.msra.mxu0 0
        %820 = vmatprep.subr.bf16.mxu0 0
        %821 = vmatpush1.bf16.xpose.msra.mxu0 0
        %822 = vmatprep.subr.bf16.mxu0 0
        %823 = vmatpush1.bf16.xpose.msra.mxu0 0
        %824 = vmatprep.subr.bf16.mxu0 0
        %825 = vmatpush1.bf16.xpose.msra.mxu0 0
        %826 = vmatprep.mubr.bf16.mxu0 %v711
        %827 = vmatmul.mubr.bf16.gmra.mrb[0].mxu0 %v710
        %v828 = vpop.f32.mrb[0].mxu0
        %v829 = vadd.f32 %v705, %v828
        %v830 = vpop.f32.mrb[0].mxu0
        %v831 = vpop.f32.mrb[0].mxu0
        %v832 = vpop.f32.mrb[0].mxu0
        %833 = vdwg.mxu0
        %834 = vst [vmem:[%s280] sm:$0xff] %v829
        %s835 = sand.u32 %s154, 1
        %s836 = scalar_lea.sflag [#allocation9], %s835
        %s837 = sand.u32 %s154, 1
        %s838 = smul.addr %s837, 8
        %s839 = scalar_lea.vmem [#allocation12], %s838
        // Predicated region
        $region49: #{tpu_custom_call.1} parent=35 // pred_check
          %p840 = pneg %p164
        $region50: #{tpu_custom_call.1} parent=35 // pred_check_branch
          %842 = sbr.rel (%p840) target = $region52
        $region51: #{tpu_custom_call.1} parent=35 // pred_region
          %s843 = smul.u32 %s32, 2
          %s844 = sadd.s32 %s843, %s33
          %s846 = ssub.s32 128, 128
          %847 = vsyncadd %s836, %s846
          %s848 = smul.addr %s844, 128
          %s849 = scalar_lea.hbm %s6, %s848
          %s851 = sshll.u32 %s839, 4
          %s852 = int_to_ptr.vmem [resolvable:$true] %s851
          %854 = dma.vmem_to_hbm [thread:$0]  %s852, 128, %s849, %s836
        $region52: #{tpu_custom_call.1} parent=35 // pred_fallthru
          _
      $region36: #{tpu_custom_call.1} parent=5 // pred_fallthru
        _
      %p855 = scmp.le.s32.totalorder 2, %s23
      // Predicated region
      $region53: #{tpu_custom_call.1} parent=5 // pred_check
        %p856 = pneg %p855
      $region54: #{tpu_custom_call.1} parent=5 // pred_check_branch
        %858 = sbr.rel (%p856) target = $region56
      $region55: #{tpu_custom_call.1} parent=5 // pred_region
        %s859 = ssub.s32 %s23, 2
        // Predicated region
        $region57: #{tpu_custom_call.1} parent=55 // pred_check
          %p860 = pneg %p170
        $region58: #{tpu_custom_call.1} parent=55 // pred_check_branch
          %862 = sbr.rel (%p860) target = $region60
        $region59: #{tpu_custom_call.1} parent=55 // pred_region
          %s863 = sand.u32 %s155, 1
          %s864 = scalar_lea.sflag [#allocation9], %s863
          %s865 = sand.u32 %s155, 1
          %s866 = smul.addr %s865, 8
          %s867 = scalar_lea.vmem [#allocation12], %s866
          %868 = dma.done %s864, 128
        $region60: #{tpu_custom_call.1} parent=55 // pred_fallthru
          _
      $region56: #{tpu_custom_call.1} parent=5 // pred_fallthru
        _
    $region6: #{tpu_custom_call.1} parent=1 // loop_footer
      %s27 = sadd.s32 1, %s23
    $region7: #{tpu_custom_call.1} parent=1 // loop_footer_branch
      %22 = sbr.rel target = $region3
    $region8: #{tpu_custom_call.1} parent=1 // loop_exit
      _
    %869 = vsyncpa [#allocation8], 1
    %s870 = scalar_lea.sflag [#allocation8], 1
    %871 = vsyncpa %s870, 1
    %872 = vsyncpa [#allocation11], 1
    %s873 = scalar_lea.sflag [#allocation11], 1
    %874 = vsyncpa %s873, 1
    %875 = vsyncpa [#allocation9], 1
    %s876 = scalar_lea.sflag [#allocation9], 1
    %877 = vsyncpa %s876, 1
  %878 = vsyncmov [#allocation4]
  %s879 = vpop.sfrf %878
  %p880 = scmp.eq.s32.totalorder %s879, 0
  %p881 = pneg %p880
  %883 = shalt.err (%p881)
  %s884 = scalar_lea.sflag [#allocation4], 1
  %885 = vsyncmov %s884
  %s886 = vpop.sfrf %885
  %p887 = scmp.eq.s32.totalorder %s886, 0
  %p888 = pneg %p887
  %890 = shalt.err (%p888)
  %s891 = scalar_lea.sflag [#allocation4], 2
  %892 = vsyncmov %s891
  %s893 = vpop.sfrf %892
  %p894 = scmp.eq.s32.totalorder %s893, 0
  %p895 = pneg %p894
  %897 = shalt.err (%p895)
  %s898 = scalar_lea.sflag [#allocation4], 3
  %899 = vsyncmov %s898
  %s900 = vpop.sfrf %899
  %p901 = scmp.eq.s32.totalorder %s900, 0
  %p902 = pneg %p901
  %904 = shalt.err (%p902)
  %s905 = scalar_lea.sflag [#allocation4], 4
  %906 = vsyncmov %s905
  %s907 = vpop.sfrf %906
  %p908 = scmp.eq.s32.totalorder %s907, 0
  %p909 = pneg %p908
  %911 = shalt.err (%p909)
  %s912 = scalar_lea.sflag [#allocation4], 5
  %913 = vsyncmov %s912
  %s914 = vpop.sfrf %913
  %p915 = scmp.eq.s32.totalorder %s914, 0
  %p916 = pneg %p915
  %918 = shalt.err (%p916)
  %s919 = scalar_lea.sflag [#allocation4], 6
  %920 = vsyncmov %s919
  %s921 = vpop.sfrf %920
  %p922 = scmp.eq.s32.totalorder %s921, 0
  %p923 = pneg %p922
  %925 = shalt.err (%p923)
  %s926 = scalar_lea.sflag [#allocation4], 7
  %927 = vsyncmov %s926
  %s928 = vpop.sfrf %927
  %p929 = scmp.eq.s32.totalorder %s928, 0
  %p930 = pneg %p929
  %932 = shalt.err (%p930)

</llo_original>
